<compile_context>
chip_gen: v7x
topology: tpu7x:2x2x1
jax: 0.10.0
libtpu: 0.0.40
codegen_flags: <defaults>
</compile_context>

<pallas_src>
import functools

import jax
import jax.numpy as jnp
from jax import lax
from jax.experimental import pallas as pl
from jax.experimental.pallas import tpu as pltpu

LANE = 128                    # vreg lane width
SUBLANE = 8                   # f32 vreg sublane count
CHUNK_R = 512                 # rows per inner accumulation chunk (256 KiB f32 temp)
TARGET_STEP_BYTES = 4 << 20   # HBM bytes per grid step (both inputs combined)


def _round_up(x, m):
    return ((x + m - 1) // m) * m


def _sublane_multiple(dtype):
    # Minimum sublane tiling multiple for the dtype (f32: 8, bf16: 16, 8-bit: 32).
    itemsize = jnp.dtype(dtype).itemsize
    return SUBLANE * max(1, 4 // itemsize)


def _detect_num_tensorcores():
    """Best-effort TensorCore count per chip (v7x: 2). Defaults to 1."""
    try:
        info = pltpu.get_tpu_info()
    except Exception:
        return 1
    for name in ("num_cores", "core_count", "num_tensorcores",
                 "tensorcore_count", "cores_per_chip", "num_cores_per_chip"):
        val = getattr(info, name, None)
        try:
            val = int(val)
        except (TypeError, ValueError):
            continue
        if val >= 1:
            return val
    return 1


def _focal_r_partial_kernel(x_ref, y_ref, o_ref, *, tile_r, chunk_r, rows,
                            needs_mask):
    """Accumulates sum(|x - y|) into a lane-dense (8, 128) partial per shard."""
    s = pl.program_id(0)            # shard index (parallel)
    i = pl.program_id(1)            # row-block step within the shard (arbitrary)
    steps = pl.num_programs(1)
    n_chunks = tile_r // chunk_r    # static

    @pl.when(i == 0)
    def _():
        o_ref[...] = jnp.zeros_like(o_ref)

    def accumulate(apply_mask):
        def body(c, carry):
            off = pl.multiple_of(c * chunk_r, chunk_r)
            # Cast in-kernel so bf16 / 8-bit inputs stream at native HBM width.
            d = jnp.abs(x_ref[pl.ds(off, chunk_r), :].astype(jnp.float32) -
                        y_ref[pl.ds(off, chunk_r), :].astype(jnp.float32))
            if apply_mask:
                # Row-only mask: global rows >= `rows` (ragged tail block and
                # fully-duplicated clamped blocks) contribute zero.
                blk = s * steps + i                    # logical, unclamped
                limit = rows - blk * tile_r - c * chunk_r   # scalar valid rows
                rid = lax.broadcasted_iota(jnp.int32, (chunk_r, 1), 0)
                d = jnp.where(rid < limit, d, 0.0)
            # vreg-shaped accumulation: pure VPU adds into the resident output.
            o_ref[0] += d.reshape(chunk_r // SUBLANE, SUBLANE, LANE).sum(axis=0)
            return carry
        lax.fori_loop(0, n_chunks, body, 0, unroll=True)

    if needs_mask:
        full_blocks = rows // tile_r          # blocks fully inside real rows
        blk = s * steps + i

        @pl.when(blk < full_blocks)           # interior blocks: unmasked path
        def _():
            accumulate(False)

        @pl.when(blk >= full_blocks)          # tail / duplicate blocks: masked
        def _():
            accumulate(True)
    else:
        accumulate(False)


def focal_r(inputs, targets, *, beta=0.2, gamma=1.0, reduction="mean",
            nshard=None):
    assert inputs.shape == targets.shape
    assert reduction in ("mean", "sum")
    n_elems = int(inputs.size)
    assert n_elems > 0

    x = inputs.reshape(-1)
    y = targets.reshape(-1)
    rows = n_elems // LANE
    tail = n_elems - rows * LANE

    tail_sum = None
    if tail:
        # <=127-element ragged tail: tiny wrapper-side reduction instead of a
        # full-array jnp.pad (which would read+write full copies of both inputs).
        tail_sum = jnp.sum(jnp.abs(x[rows * LANE:].astype(jnp.float32) -
                                   y[rows * LANE:].astype(jnp.float32)))
        x = x[: rows * LANE]
        y = y[: rows * LANE]

    if rows == 0:
        total = tail_sum
    else:
        x2 = x.reshape(rows, LANE)
        y2 = y.reshape(rows, LANE)

        # Dtype-adaptive tile: ~TARGET_STEP_BYTES of HBM traffic per grid step
        # (f32: 4096 rows, bf16: 8192, 8-bit: 16384).  Double-buffered for two
        # inputs this stays <=8 MiB of VMEM -> under the scoped default on all
        # generations, so no vmem_limit_bytes override is needed.
        pair_bytes = x2.dtype.itemsize + y2.dtype.itemsize
        base_rows = max(CHUNK_R,
                        (TARGET_STEP_BYTES // (LANE * pair_bytes))
                        // CHUNK_R * CHUNK_R)
        sub_mult = max(_sublane_multiple(x2.dtype), _sublane_multiple(y2.dtype))
        rows_cover = _round_up(rows, sub_mult)
        if rows_cover >= base_rows:
            tile_r = base_rows
        elif rows_cover > CHUNK_R:
            tile_r = _round_up(rows_cover, CHUNK_R)   # keep tile % chunk == 0
        else:
            tile_r = rows_cover
        tile_r = int(tile_r)
        chunk_r = int(min(CHUNK_R, tile_r))

        row_blocks = int(pl.cdiv(rows, tile_r))
        if nshard is None:
            nshard = _detect_num_tensorcores()        # 1 on v5e/v6e, 2 on v7x
        nshard = int(max(1, min(int(nshard), row_blocks)))
        steps = int(pl.cdiv(row_blocks, nshard))

        # Mask exactly when the grid over-covers the real rows: the ragged
        # final block and/or the clamped duplicate block of an uneven shard
        # split.  Tied directly to grid coverage so it cannot drift out of
        # sync with the tile/shard rounding above.
        needs_mask = (nshard * steps * tile_r) != rows
        last_block = row_blocks - 1

        def in_map(s, i):
            # Clamp so an over-hanging shard tail never reads an OOB block;
            # the duplicate data is fully masked (its logical rows >= rows).
            return (jnp.minimum(s * steps + i, last_block), 0)

        kernel = functools.partial(
            _focal_r_partial_kernel, tile_r=tile_r, chunk_r=chunk_r,
            rows=int(rows), needs_mask=bool(needs_mask))

        cost = pl.CostEstimate(
            flops=3 * n_elems, transcendentals=0,
            bytes_accessed=n_elems * pair_bytes + nshard * SUBLANE * LANE * 4)

        partials = pl.pallas_call(
            kernel,
            out_shape=jax.ShapeDtypeStruct((nshard, SUBLANE, LANE), jnp.float32),
            grid_spec=pltpu.PrefetchScalarGridSpec(
                num_scalar_prefetch=0,
                grid=(nshard, steps),
                in_specs=[pl.BlockSpec((tile_r, LANE), in_map),
                          pl.BlockSpec((tile_r, LANE), in_map)],
                out_specs=pl.BlockSpec((1, SUBLANE, LANE),
                                       lambda s, i: (s, 0, 0)),
            ),
            # TODO(synk): on v7x, verify in xprof that the "parallel" shard
            # axis maps onto both TensorCores; if it stays serial, switch that
            # axis to pltpu.CORE_PARALLEL (or pl.core_map over a tensorcore
            # mesh) for this partial-sum kernel.
            compiler_params=pltpu.CompilerParams(
                dimension_semantics=("parallel", "arbitrary")),
            cost_estimate=cost,
        )(x2, y2)

        total = jnp.sum(partials)
        if tail_sum is not None:
            total = total + tail_sum

    l1 = total / jnp.float32(n_elems) if reduction == "mean" else total
    focal_w = jnp.power(jax.nn.sigmoid(jnp.abs(jnp.float32(beta) * l1)),
                        jnp.float32(gamma))
    return focal_w * l1


def focal_r_ref(inputs, targets, *, beta=0.2, gamma=1.0, reduction="mean"):
    d = jnp.abs(inputs.astype(jnp.float32) - targets.astype(jnp.float32))
    l1 = jnp.mean(d) if reduction == "mean" else jnp.sum(d)
    return jnp.power(jax.nn.sigmoid(jnp.abs(beta * l1)), gamma) * l1


if __name__ == "__main__":
    beta, gamma, reduction = 0.2, 1.0, "mean"
    key = jax.random.PRNGKey(0)
    k1, k2, k3, k4, k5, k6 = jax.random.split(key, 6)

    # 1) Small, module-consistent shapes (NCHW-ish regression outputs).
    inputs = jax.random.normal(k1, (2, 4, 16, 16), dtype=jnp.float32)
    targets = jax.random.normal(k2, (2, 4, 16, 16), dtype=jnp.float32)
    loss = focal_r(inputs, targets, beta=beta, gamma=gamma, reduction=reduction)
    jax.block_until_ready(loss)
    ref = focal_r_ref(inputs, targets, beta=beta, gamma=gamma, reduction=reduction)
    assert jnp.allclose(loss, ref, rtol=1e-5, atol=1e-6), (loss, ref)

    # 2) Native bf16 streaming (in-kernel f32 cast), same small shape.
    loss_bf = focal_r(inputs.astype(jnp.bfloat16), targets.astype(jnp.bfloat16),
                      beta=beta, gamma=gamma, reduction=reduction)
    jax.block_until_ready(loss_bf)
    ref_bf = focal_r_ref(inputs.astype(jnp.bfloat16), targets.astype(jnp.bfloat16),
                         beta=beta, gamma=gamma, reduction=reduction)
    assert jnp.allclose(loss_bf, ref_bf, rtol=1e-5, atol=1e-6), (loss_bf, ref_bf)

    # 3) 'sum' reduction on the small shape.
    loss_sum = focal_r(inputs, targets, beta=beta, gamma=gamma, reduction="sum")
    jax.block_until_ready(loss_sum)
    ref_sum = focal_r_ref(inputs, targets, beta=beta, gamma=gamma, reduction="sum")
    assert jnp.allclose(loss_sum, ref_sum, rtol=1e-5, atol=1e-4), (loss_sum, ref_sum)

    # 4) Larger input: exercises the 4096-row f32 tiles and multi-step
    #    accumulation (rows = 8192 -> 2 row blocks).
    big_x = jax.random.normal(k3, (8, 8, 128, 128), dtype=jnp.float32)
    big_y = jax.random.normal(k4, (8, 8, 128, 128), dtype=jnp.float32)
    loss_big = focal_r(big_x, big_y, beta=beta, gamma=gamma, reduction=reduction)
    jax.block_until_ready(loss_big)
    ref_big = focal_r_ref(big_x, big_y, beta=beta, gamma=gamma, reduction=reduction)
    assert jnp.allclose(loss_big, ref_big, rtol=1e-4, atol=1e-6), (loss_big, ref_big)

    # 5) Explicit 2-shard grid with an odd block count (3 blocks across 2
    #    shards): exercises the clamped duplicate block + row-mask path.
    odd_x = jax.random.normal(k5, (3, 4096, 128), dtype=jnp.float32)
    odd_y = jax.random.normal(k6, (3, 4096, 128), dtype=jnp.float32)
    loss_odd = focal_r(odd_x, odd_y, beta=beta, gamma=gamma,
                       reduction=reduction, nshard=2)
    jax.block_until_ready(loss_odd)
    ref_odd = focal_r_ref(odd_x, odd_y, beta=beta, gamma=gamma, reduction=reduction)
    assert jnp.allclose(loss_odd, ref_odd, rtol=1e-4, atol=1e-6), (loss_odd, ref_odd)

    # 6) Non-lane-aligned numel (ragged tail handled wrapper-side, row mask
    #    in-kernel, no jnp.pad full-array copy).
    rag_x = jax.random.normal(k5, (3, 5, 7, 11), dtype=jnp.float32)
    rag_y = jax.random.normal(k6, (3, 5, 7, 11), dtype=jnp.float32)
    loss_rag = focal_r(rag_x, rag_y, beta=beta, gamma=gamma, reduction=reduction)
    jax.block_until_ready(loss_rag)
    ref_rag = focal_r_ref(rag_x, rag_y, beta=beta, gamma=gamma, reduction=reduction)
    assert jnp.allclose(loss_rag, ref_rag, rtol=1e-5, atol=1e-6), (loss_rag, ref_rag)

    print("KERNEL_OK")
</pallas_src>

<mosaic_0001>
module attributes {stable_mosaic.version = 11 : i64} {
  func.func @_focal_r_partial_kernel(%arg0: i32, %arg1: i32, %arg2: memref<16x128xf32, #tpu.memory_space<vmem>>, %arg3: memref<16x128xf32, #tpu.memory_space<vmem>>, %arg4: memref<1x8x128xf32, #tpu.memory_space<vmem>>) attributes {dimension_semantics = [#tpu.dimension_semantics<parallel>, #tpu.dimension_semantics<arbitrary>], iteration_bounds = array<i64: 1, 1>, scalar_prefetch = 0 : i64, scratch_operands = 0 : i64, tpu.core_type = #tpu.core_type<tc>, window_params = [{transform_indices = @transform_0, window_bounds = array<i64: 16, 128>}, {transform_indices = @transform_1, window_bounds = array<i64: 16, 128>}, {transform_indices = @transform_2, window_bounds = array<i64: 1, 8, 128>}]} {
    %c0_i32 = arith.constant 0 : i32
    %0 = arith.cmpi eq, %arg1, %c0_i32 : i32
    %1 = arith.extui %0 : i1 to i32
    %c0_i32_0 = arith.constant 0 : i32
    %2 = arith.cmpi ne, %1, %c0_i32_0 : i32
    scf.if %2 {
      %cst_9 = arith.constant 0.000000e+00 : f32
      %19 = vector.broadcast %cst_9 : f32 to vector<1x8x128xf32>
      %c0_10 = arith.constant 0 : index
      %c0_11 = arith.constant 0 : index
      %c0_12 = arith.constant 0 : index
      %20 = vector.load %arg4[%c0_10, %c0_11, %c0_12] : memref<1x8x128xf32, #tpu.memory_space<vmem>>, vector<1x8x128xf32>
      tpu.vector_store %arg4[%c0_10, %c0_11, %c0_12], %19 {strides = array<i32>} : memref<1x8x128xf32, #tpu.memory_space<vmem>>, vector<1x8x128xf32>,
    } else {
    }
    %c0_i32_1 = arith.constant 0 : i32
    %c16_i32 = arith.constant 16 : i32
    %3 = arith.muli %c0_i32_1, %c16_i32 : i32
    %4 = tpu.assume_multiple %3, 16 : i32
    %5 = arith.index_cast %4 : i32 to index
    %c0 = arith.constant 0 : index
    %6 = vector.load %arg2[%5, %c0] : memref<16x128xf32, #tpu.memory_space<vmem>>, vector<16x128xf32>
    %7 = arith.index_cast %4 : i32 to index
    %c0_2 = arith.constant 0 : index
    %8 = vector.load %arg3[%7, %c0_2] : memref<16x128xf32, #tpu.memory_space<vmem>>, vector<16x128xf32>
    %9 = arith.subf %6, %8 : vector<16x128xf32>
    %10 = math.absf %9 : vector<16x128xf32>
    %c0_3 = arith.constant 0 : index
    %c0_4 = arith.constant 0 : index
    %c0_5 = arith.constant 0 : index
    %11 = vector.load %arg4[%c0_3, %c0_4, %c0_5] : memref<1x8x128xf32, #tpu.memory_space<vmem>>, vector<1x8x128xf32>
    %12 = vector.shape_cast %11 : vector<1x8x128xf32> to vector<8x128xf32>
    %13 = vector.shape_cast %10 : vector<16x128xf32> to vector<2x8x128xf32>
    %cst = arith.constant dense<0.000000e+00> : vector<8x128xf32>
    %14 = vector.multi_reduction <add>, %13, %cst [0] : vector<2x8x128xf32> to vector<8x128xf32>
    %15 = arith.addf %12, %14 : vector<8x128xf32>
    %c0_6 = arith.constant 0 : index
    %c0_7 = arith.constant 0 : index
    %c0_8 = arith.constant 0 : index
    %16 = vector.load %arg4[%c0_6, %c0_7, %c0_8] : memref<1x8x128xf32, #tpu.memory_space<vmem>>, vector<1x8x128xf32>
    %17 = vector.shape_cast %16 : vector<1x8x128xf32> to vector<8x128xf32>
    %18 = vector.shape_cast %15 : vector<8x128xf32> to vector<1x8x128xf32>
    tpu.vector_store %arg4[%c0_6, %c0_7, %c0_8], %18 {strides = array<i32>} : memref<1x8x128xf32, #tpu.memory_space<vmem>>, vector<1x8x128xf32>,
    %c1_i32 = arith.constant 1 : i32
    return
  }
  func.func @transform_0(%arg0: i32, %arg1: i32) -> (i32, i32) {
    %c1_i32 = arith.constant 1 : i32
    %0 = arith.muli %arg0, %c1_i32 : i32
    %1 = arith.addi %0, %arg1 : i32
    %c0_i32 = arith.constant 0 : i32
    %2 = arith.minsi %1, %c0_i32 : i32
    %c0_i32_0 = arith.constant 0 : i32
    %c0_i32_1 = arith.constant 0 : i32
    return %2, %c0_i32_0 : i32, i32
  }
  func.func @transform_1(%arg0: i32, %arg1: i32) -> (i32, i32) {
    %c1_i32 = arith.constant 1 : i32
    %0 = arith.muli %arg0, %c1_i32 : i32
    %1 = arith.addi %0, %arg1 : i32
    %c0_i32 = arith.constant 0 : i32
    %2 = arith.minsi %1, %c0_i32 : i32
    %c0_i32_0 = arith.constant 0 : i32
    %c0_i32_1 = arith.constant 0 : i32
    return %2, %c0_i32_0 : i32, i32
  }
  func.func @transform_2(%arg0: i32, %arg1: i32) -> (i32, i32, i32) {
    %c0_i32 = arith.constant 0 : i32
    %c0_i32_0 = arith.constant 0 : i32
    %c0_i32_1 = arith.constant 0 : i32
    return %arg0, %c0_i32, %c0_i32_0 : i32, i32, i32
  }
}

</mosaic_0001>

<llo_original>
// kernel: tpu_custom_call.1
$region0: #{tpu_custom_call.1}
  #allocation0 [shape = 'u32[]', space=smem, size = 0x4, offset = 0x4, fixed_abs, tag = 'smem constant byte address 0x4 - core index']
  #allocation1 [shape = 'u32[144,128]{1,0:T(1,128)}', space=vmem, size = 0x12000, scoped, tag = 'internal scratch']
  %s0 = inlined_call_operand.hbm [shape: f32[16,128], index: 0, kind: input, shape index: {}]
  %s1 = inlined_call_operand.hbm [shape: f32[16,128], index: 1, kind: input, shape index: {}]
  %s2 = inlined_call_operand.hbm [shape: f32[1,8,128], index: 2, kind: output, shape index: {}]
  %s3 = sld [smem:[#allocation0]]
  $region30: #{tpu_custom_call.1} parent=0
    _
  %s5 = ssub.s32 1, %s3
  %s6 = scalar_select 0, %s5, %s3
  $region1: #{tpu_custom_call.1} parent=0
    #allocation2 [shape = 'u8[8192]{0}', space=vmem, size = 0x2000, scoped, tag = 'input window, operand 0, single buffered']
    #allocation3 [shape = 's32[1]{0}', space=sflag, size = 0x4, scoped, tag = 'scoped memory for tpu_custom_call.1']
    #allocation4 [shape = 's32[1]{0}', space=sflag, size = 0x4, scoped, tag = 'scoped memory for tpu_custom_call.1']
    #allocation5 [shape = 'u8[8192]{0}', space=vmem, size = 0x2000, scoped, tag = 'input window, operand 1, single buffered']
    #allocation6 [shape = 's32[1]{0}', space=sflag, size = 0x4, scoped, tag = 'scoped memory for tpu_custom_call.1']
    #allocation7 [shape = 'u8[4096]{0}', space=vmem, size = 0x1000, scoped, tag = 'output window, operand 0, single buffered']
    %7 = vsyncpa [#allocation3], 0
    %8 = vsyncpa [#allocation6], 0
    %9 = vsyncpa [#allocation4], 0
    // Predicated region
    $region2: #{tpu_custom_call.1} parent=1 // pred_check
      _
    $region3: #{tpu_custom_call.1} parent=1 // pred_check_branch
      %11 = sbr.rel (0) target = $region5
    $region4: #{tpu_custom_call.1} parent=1 // pred_region
      %s12 = sadd.s32 0, 0
      %p13 = scmp.lt.s32.totalorder %s12, 0
      %s14 = scalar_select %p13, %s12, 0
      %s15 = smul.u32 2, %s14
      %s17 = ssub.s32 256, 256
      %18 = vsyncadd [#allocation3], %s17
      %s19 = smul.addr %s15, 128
      %s20 = scalar_lea.hbm %s0, %s19
      %s21 = sshll.u32 [#allocation2], 4
      %s22 = int_to_ptr.vmem [resolvable:$true] %s21
      %27 = dma.hbm_to_vmem [thread:$0]  %s20, 256, %s22, [#allocation3], 128, 128, 8
    $region5: #{tpu_custom_call.1} parent=1 // pred_fallthru
      _
    // Predicated region
    $region6: #{tpu_custom_call.1} parent=1 // pred_check
      _
    $region7: #{tpu_custom_call.1} parent=1 // pred_check_branch
      %29 = sbr.rel (0) target = $region9
    $region8: #{tpu_custom_call.1} parent=1 // pred_region
      %s30 = sadd.s32 0, 0
      %p31 = scmp.lt.s32.totalorder %s30, 0
      %s32 = scalar_select %p31, %s30, 0
      %s33 = smul.u32 2, %s32
      %s35 = ssub.s32 256, 256
      %36 = vsyncadd [#allocation6], %s35
      %s37 = smul.addr %s33, 128
      %s38 = scalar_lea.hbm %s1, %s37
      %s39 = sshll.u32 [#allocation5], 4
      %s40 = int_to_ptr.vmem [resolvable:$true] %s39
      %45 = dma.hbm_to_vmem [thread:$0]  %s38, 256, %s40, [#allocation6], 128, 128, 8
    $region9: #{tpu_custom_call.1} parent=1 // pred_fallthru
      _
    // Predicated region
    $region10: #{tpu_custom_call.1} parent=1 // pred_check
      _
    $region11: #{tpu_custom_call.1} parent=1 // pred_check_branch
      %47 = sbr.rel (0) target = $region13
    $region12: #{tpu_custom_call.1} parent=1 // pred_region
      %48 = dma.done [#allocation3], 256
    $region13: #{tpu_custom_call.1} parent=1 // pred_fallthru
      _
    // Predicated region
    $region14: #{tpu_custom_call.1} parent=1 // pred_check
      _
    $region15: #{tpu_custom_call.1} parent=1 // pred_check_branch
      %50 = sbr.rel (0) target = $region17
    $region16: #{tpu_custom_call.1} parent=1 // pred_region
      %51 = dma.done [#allocation6], 256
    $region17: #{tpu_custom_call.1} parent=1 // pred_fallthru
      _
    %s52 = sadd.s32 0, 0
    %p53 = scmp.lt.s32.totalorder %s52, 0
    %s54 = scalar_select %p53, %s52, 0
    %s55 = smul.u32 2, %s54
    %s56 = sadd.s32 0, 0
    %p57 = scmp.lt.s32.totalorder %s56, 0
    %s58 = scalar_select %p57, %s56, 0
    %s59 = smul.u32 2, %s58
    %p60 = scmp.eq.s32.totalorder 0, 0
    // Predicated region
    $region18: #{tpu_custom_call.1} parent=1 // pred_check
      %p61 = pneg %p60
    $region19: #{tpu_custom_call.1} parent=1 // pred_check_branch
      %63 = sbr.rel (%p61) target = $region21
    $region20: #{tpu_custom_call.1} parent=1 // pred_region
      %64 = vst [vmem:[#allocation7] sm:$0xff] 0.0
    $region21: #{tpu_custom_call.1} parent=1 // pred_fallthru
      _
    %v65 = vld [vmem:[#allocation2] sm:$0xff]
    %v66 = vld [vmem:[#allocation2 + $0x8] sm:$0xff]
    %v67 = vld [vmem:[#allocation5] sm:$0xff]
    %v68 = vld [vmem:[#allocation5 + $0x8] sm:$0xff]
    %v69 = vsub.f32 %v65, %v67
    %v70 = vsub.f32 %v66, %v68
    %v71 = vand.u32 2147483647, %v69
    %v72 = vand.u32 2147483647, %v70
    %v73 = vld [vmem:[#allocation7] sm:$0xff]
    %v74 = vadd.f32 %v71, %v72
    %v75 = vadd.f32 %v73, %v74
    %76 = vst [vmem:[#allocation7] sm:$0xff] %v75
    // Predicated region
    $region22: #{tpu_custom_call.1} parent=1 // pred_check
      _
    $region23: #{tpu_custom_call.1} parent=1 // pred_check_branch
      %78 = sbr.rel (0) target = $region25
    $region24: #{tpu_custom_call.1} parent=1 // pred_region
      %s80 = ssub.s32 128, 128
      %81 = vsyncadd [#allocation4], %s80
      %s83 = sshll.u32 [#allocation7], 4
      %s84 = int_to_ptr.vmem [resolvable:$true] %s83
      %86 = dma.vmem_to_hbm [thread:$0]  %s84, 128, %s2, [#allocation4]
    $region25: #{tpu_custom_call.1} parent=1 // pred_fallthru
      _
    // Predicated region
    $region26: #{tpu_custom_call.1} parent=1 // pred_check
      _
    $region27: #{tpu_custom_call.1} parent=1 // pred_check_branch
      %88 = sbr.rel (0) target = $region29
    $region28: #{tpu_custom_call.1} parent=1 // pred_region
      %89 = dma.done [#allocation4], 128
    $region29: #{tpu_custom_call.1} parent=1 // pred_fallthru
      _
    %90 = vsyncpa [#allocation3], 1
    %91 = vsyncpa [#allocation6], 1
    %92 = vsyncpa [#allocation4], 1

</llo_original>
